<compile_context>
chip_gen: v7x
topology: tpu7x:2x2x1
jax: 0.10.0
libtpu: 0.0.40
codegen_flags: <defaults>
</compile_context>

<pallas_src>
import jax
import jax.numpy as jnp
from jax.experimental import pallas as pl
from jax.experimental.pallas import tpu as pltpu

# ---------------------------------------------------------------------------
# Problem sizes (small, consistent with a per-pair batch of 1-D curves)
# ---------------------------------------------------------------------------
B = 2          # batch (pairs)
L = 64         # curve length (data_y / data_q)
H = 32         # hidden width
ZDIM = 16      # latent dim
TWO_L = 2 * L  # 128 -> lane-dense blocks

# Packed-slab geometry
ENC_W_ROWS = TWO_L + H            # rows per encoder in the encoder-weight slab
ENC_B_SIZE = H + 2 * ZDIM         # bias lanes per encoder (b1 | bmu | blv)
BD1_OFF = 2 * ENC_B_SIZE          # decoder layer-1 bias offset in bias slab
BD2_OFF = BD1_OFF + 2 * H         # decoder layer-2 bias offset
BIAS_W = BD2_OFF + 2 * L          # 320 total bias lanes
OUT_W = TWO_L + 3 * ZDIM          # 128 recon lanes + 48 latent lanes = 176


def _vmem_spec():
    # Whole arrays resident in VMEM; total footprint < 200 KiB, no grid needed.
    return pl.BlockSpec(memory_space=pltpu.MemorySpace.VMEM)


# ---------------------------------------------------------------------------
# Fused PairVAE kernel: 2 encoders (2 matmuls each) + fused decoder pair
# (2 matmuls total) + 2 lane-dense output stores.
# ---------------------------------------------------------------------------
def _pairvae_fused_kernel(data_ref, encw_ref, decw_ref, bias_ref, out_ref):
    # data_ref : (2B, 2L + ZDIM)   rows [0:B]=SAXS [y|q|eps], rows [B:2B]=LES
    # encw_ref : (2*(2L+H), H)     [W1_s; Whead_s; W1_l; Whead_l]
    # decw_ref : (ZDIM + 2H, 2L)   [Wd1_s|Wd1_l|0 ; blockdiag(Wd2_s, Wd2_l)]
    # bias_ref : (1, BIAS_W)       [b1_s|bmu_s|blv_s|b1_l|bmu_l|blv_l|
    #                               db1_s|db1_l|db2_s|db2_l]
    # out_ref  : (2B, OUT_W)

    def encode(x, eps, w_off, b_off):
        w1 = encw_ref[w_off:w_off + TWO_L, :]                        # (2L, H)
        wh = encw_ref[w_off + TWO_L:w_off + TWO_L + H, :]            # (H, 2Z)
        b1 = bias_ref[:, b_off:b_off + H]                            # (1, H)
        bh = bias_ref[:, b_off + H:b_off + H + 2 * ZDIM]             # (1, 2Z)
        h = jnp.maximum(
            jnp.dot(x, w1, preferred_element_type=jnp.float32) + b1, 0.0)
        head = jnp.dot(h, wh, preferred_element_type=jnp.float32) + bh
        mu = head[:, 0:ZDIM]
        lv = head[:, ZDIM:2 * ZDIM]
        z = mu + jnp.exp(0.5 * lv) * eps
        return head, z                                               # head=[mu|lv]

    x_s = data_ref[0:B, 0:TWO_L]
    x_l = data_ref[B:2 * B, 0:TWO_L]
    eps_s = data_ref[0:B, TWO_L:TWO_L + ZDIM]
    eps_l = data_ref[B:2 * B, TWO_L:TWO_L + ZDIM]

    head_s, z_s = encode(x_s, eps_s, 0, 0)
    head_l, z_l = encode(x_l, eps_l, ENC_W_ROWS, ENC_B_SIZE)

    # --- fused decoder pair on stacked Z = [z_saxs ; z_les] ------------------
    z_all = jnp.concatenate([z_s, z_l], axis=0)                      # (2B, Z)
    wd1 = decw_ref[0:ZDIM, 0:2 * H]                                  # (Z, 2H)
    wd2 = decw_ref[ZDIM:ZDIM + 2 * H, :]                             # (2H, 2L)
    bd1 = bias_ref[:, BD1_OFF:BD1_OFF + 2 * H]                       # (1, 2H)
    bd2 = bias_ref[:, BD2_OFF:BD2_OFF + 2 * L]                       # (1, 2L)
    h_dec = jnp.maximum(
        jnp.dot(z_all, wd1, preferred_element_type=jnp.float32) + bd1, 0.0)
    dec_all = jnp.dot(h_dec, wd2, preferred_element_type=jnp.float32) + bd2
    # dec_all layout:
    #   rows [0:B]  : [recon_saxs      | recon_saxs2les]
    #   rows [B:2B] : [recon_les2saxs  | recon_les     ]

    lat = jnp.concatenate(
        [jnp.concatenate([head_s, z_s], axis=1),
         jnp.concatenate([head_l, z_l], axis=1)], axis=0)            # (2B, 3Z)

    # Two stores: unmasked 128-lane recon block + 48-lane latent block.
    out_ref[:, 0:TWO_L] = dec_all
    out_ref[:, TWO_L:TWO_L + 3 * ZDIM] = lat


# ---------------------------------------------------------------------------
# Host-side (load-time) parameter packing into lane-dense slabs
# ---------------------------------------------------------------------------
def pack_pairvae_params(p_saxs, p_les):
    def enc_block(p):
        return jnp.concatenate(
            [jnp.concatenate([p["enc_w1y"], p["enc_w1q"]], axis=0),   # (2L, H)
             jnp.concatenate([p["enc_wmu"], p["enc_wlv"]], axis=1)],  # (H, 2Z)
            axis=0)
    encw = jnp.concatenate([enc_block(p_saxs), enc_block(p_les)], axis=0)

    wd1 = jnp.concatenate([p_saxs["dec_w1"], p_les["dec_w1"]], axis=1)  # (Z, 2H)
    wd1 = jnp.pad(wd1, ((0, 0), (0, 2 * L - 2 * H)))                    # (Z, 2L)
    zer = jnp.zeros((H, L), jnp.float32)
    wd2 = jnp.concatenate(
        [jnp.concatenate([p_saxs["dec_w2"], zer], axis=1),
         jnp.concatenate([zer, p_les["dec_w2"]], axis=1)], axis=0)      # (2H, 2L)
    decw = jnp.concatenate([wd1, wd2], axis=0)                          # (Z+2H, 2L)

    bias = jnp.concatenate(
        [p_saxs["enc_b1"], p_saxs["enc_bmu"], p_saxs["enc_blv"],
         p_les["enc_b1"], p_les["enc_bmu"], p_les["enc_blv"],
         p_saxs["dec_b1"], p_les["dec_b1"],
         p_saxs["dec_b2"], p_les["dec_b2"]], axis=1)                    # (1, 320)
    return encw, decw, bias


# ---------------------------------------------------------------------------
# Forward wrapper (mirrors PairVAE.forward: own + cross decodes)
# ---------------------------------------------------------------------------
@jax.jit
def pairvae_forward(packed_params, batch, eps_saxs, eps_les):
    encw, decw, bias = packed_params
    data = jnp.concatenate(
        [jnp.concatenate([batch["data_y_saxs"], batch["data_q_saxs"],
                          eps_saxs], axis=1),
         jnp.concatenate([batch["data_y_les"], batch["data_q_les"],
                          eps_les], axis=1)],
        axis=0).astype(jnp.float32)                           # (2B, 2L + ZDIM)

    # NOTE: at real batch sizes, grid over batch rows and add
    # compiler_params=pltpu.CompilerParams(dimension_semantics=("parallel",))
    # to use both v7x TensorCores; at B=2 a single grid point is optimal.
    slab = pl.pallas_call(
        _pairvae_fused_kernel,
        out_shape=jax.ShapeDtypeStruct((2 * B, OUT_W), jnp.float32),
        in_specs=[_vmem_spec()] * 4,
        out_specs=_vmem_spec(),
    )(data, encw, decw, bias)

    dec = slab[:, 0:TWO_L]
    lat = slab[:, TWO_L:]
    return {
        "recon_saxs":     dec[0:B, 0:L],
        "recon_saxs2les": dec[0:B, L:2 * L],
        "recon_les2saxs": dec[B:2 * B, 0:L],
        "recon_les":      dec[B:2 * B, L:2 * L],
        "mu_saxs":     lat[0:B, 0:ZDIM],
        "logvar_saxs": lat[0:B, ZDIM:2 * ZDIM],
        "z_saxs":      lat[0:B, 2 * ZDIM:3 * ZDIM],
        "mu_les":      lat[B:2 * B, 0:ZDIM],
        "logvar_les":  lat[B:2 * B, ZDIM:2 * ZDIM],
        "z_les":       lat[B:2 * B, 2 * ZDIM:3 * ZDIM],
    }


# ---------------------------------------------------------------------------
# Pure-JAX reference (for correctness check)
# ---------------------------------------------------------------------------
def _ref_pairvae_forward(params_saxs, params_les, batch, eps_saxs, eps_les):
    hp = jax.lax.Precision.HIGHEST

    def enc(p, y, q, eps):
        h = jnp.maximum(jnp.dot(y, p["enc_w1y"], precision=hp)
                        + jnp.dot(q, p["enc_w1q"], precision=hp)
                        + p["enc_b1"], 0.0)
        mu = jnp.dot(h, p["enc_wmu"], precision=hp) + p["enc_bmu"]
        lv = jnp.dot(h, p["enc_wlv"], precision=hp) + p["enc_blv"]
        return mu, lv, mu + jnp.exp(0.5 * lv) * eps

    def dec(p, z):
        h = jnp.maximum(jnp.dot(z, p["dec_w1"], precision=hp) + p["dec_b1"], 0.0)
        return jnp.dot(h, p["dec_w2"], precision=hp) + p["dec_b2"]

    mu_s, lv_s, z_s = enc(params_saxs, batch["data_y_saxs"],
                          batch["data_q_saxs"], eps_saxs)
    mu_l, lv_l, z_l = enc(params_les, batch["data_y_les"],
                          batch["data_q_les"], eps_les)
    return {
        "recon_saxs": dec(params_saxs, z_s),
        "recon_les": dec(params_les, z_l),
        "recon_saxs2les": dec(params_les, z_s),
        "recon_les2saxs": dec(params_saxs, z_l),
        "mu_saxs": mu_s, "logvar_saxs": lv_s, "z_saxs": z_s,
        "mu_les": mu_l, "logvar_les": lv_l, "z_les": z_l,
    }


# ---------------------------------------------------------------------------
# Deterministic parameter init (synthetic stand-in for checkpoint weights)
# ---------------------------------------------------------------------------
def init_vae_params(key):
    ks = jax.random.split(key, 10)
    s, sb = 0.05, 0.01
    return {
        "enc_w1y": s * jax.random.normal(ks[0], (L, H), jnp.float32),
        "enc_w1q": s * jax.random.normal(ks[1], (L, H), jnp.float32),
        "enc_b1": sb * jax.random.normal(ks[2], (1, H), jnp.float32),
        "enc_wmu": s * jax.random.normal(ks[3], (H, ZDIM), jnp.float32),
        "enc_bmu": sb * jax.random.normal(ks[4], (1, ZDIM), jnp.float32),
        "enc_wlv": s * jax.random.normal(ks[5], (H, ZDIM), jnp.float32),
        "enc_blv": sb * jax.random.normal(ks[6], (1, ZDIM), jnp.float32),
        "dec_w1": s * jax.random.normal(ks[7], (ZDIM, H), jnp.float32),
        "dec_b1": sb * jax.random.normal(ks[8], (1, H), jnp.float32),
        "dec_w2": s * jax.random.normal(ks[9], (H, L), jnp.float32),
        "dec_b2": jnp.zeros((1, L), jnp.float32),
    }


# ---------------------------------------------------------------------------
# Main
# ---------------------------------------------------------------------------
if __name__ == "__main__":
    root = jax.random.PRNGKey(0)
    k_data, k_saxs, k_les, k_eps = jax.random.split(root, 4)
    kd = jax.random.split(k_data, 4)
    ke = jax.random.split(k_eps, 2)

    batch = {
        "data_y_saxs": jax.random.normal(kd[0], (B, L), jnp.float32),
        "data_q_saxs": jax.random.normal(kd[1], (B, L), jnp.float32),
        "data_y_les": jax.random.normal(kd[2], (B, L), jnp.float32),
        "data_q_les": jax.random.normal(kd[3], (B, L), jnp.float32),
        "metadata": None,  # passed through in the original; unused for compute
    }

    params_saxs = init_vae_params(k_saxs)
    params_les = init_vae_params(k_les)
    packed = pack_pairvae_params(params_saxs, params_les)

    eps_saxs = jax.random.normal(ke[0], (B, ZDIM), jnp.float32)
    eps_les = jax.random.normal(ke[1], (B, ZDIM), jnp.float32)

    out = pairvae_forward(packed, batch, eps_saxs, eps_les)
    out = jax.block_until_ready(out)

    ref = _ref_pairvae_forward(params_saxs, params_les, batch,
                               eps_saxs, eps_les)

    for k in ("recon_saxs", "recon_les", "recon_saxs2les", "recon_les2saxs",
              "mu_saxs", "logvar_saxs", "z_saxs",
              "mu_les", "logvar_les", "z_les"):
        assert out[k].shape == ref[k].shape, (k, out[k].shape, ref[k].shape)
        err = float(jnp.max(jnp.abs(out[k] - ref[k])))
        assert jnp.allclose(out[k], ref[k], atol=1e-3, rtol=1e-3), (k, err)

    print("KERNEL_OK")
</pallas_src>

<mosaic_0001>
module attributes {stable_mosaic.version = 11 : i64} {
  func.func @_pairvae_fused_kernel(%arg0: memref<4x144xf32, #tpu.memory_space<vmem>>, %arg1: memref<320x32xf32, #tpu.memory_space<vmem>>, %arg2: memref<80x128xf32, #tpu.memory_space<vmem>>, %arg3: memref<1x320xf32, #tpu.memory_space<vmem>>, %arg4: memref<4x176xf32, #tpu.memory_space<vmem>>) attributes {dimension_semantics = [], scalar_prefetch = 0 : i64, scratch_operands = 0 : i64, tpu.core_type = #tpu.core_type<tc>} {
    %c0 = arith.constant 0 : index
    %c0_0 = arith.constant 0 : index
    %0 = vector.load %arg0[%c0, %c0_0] : memref<4x144xf32, #tpu.memory_space<vmem>>, vector<2x128xf32>
    %c2 = arith.constant 2 : index
    %c0_1 = arith.constant 0 : index
    %1 = vector.load %arg0[%c2, %c0_1] : memref<4x144xf32, #tpu.memory_space<vmem>>, vector<2x128xf32>
    %c0_2 = arith.constant 0 : index
    %c128 = arith.constant 128 : index
    %2 = vector.load %arg0[%c0_2, %c128] : memref<4x144xf32, #tpu.memory_space<vmem>>, vector<2x16xf32>
    %c2_3 = arith.constant 2 : index
    %c128_4 = arith.constant 128 : index
    %3 = vector.load %arg0[%c2_3, %c128_4] : memref<4x144xf32, #tpu.memory_space<vmem>>, vector<2x16xf32>
    %c0_5 = arith.constant 0 : index
    %c0_6 = arith.constant 0 : index
    %4 = vector.load %arg1[%c0_5, %c0_6] : memref<320x32xf32, #tpu.memory_space<vmem>>, vector<128x32xf32>
    %c128_7 = arith.constant 128 : index
    %c0_8 = arith.constant 0 : index
    %5 = vector.load %arg1[%c128_7, %c0_8] : memref<320x32xf32, #tpu.memory_space<vmem>>, vector<32x32xf32>
    %c0_9 = arith.constant 0 : index
    %c0_10 = arith.constant 0 : index
    %6 = vector.load %arg3[%c0_9, %c0_10] : memref<1x320xf32, #tpu.memory_space<vmem>>, vector<1x32xf32>
    %c0_11 = arith.constant 0 : index
    %c32 = arith.constant 32 : index
    %7 = vector.load %arg3[%c0_11, %c32] : memref<1x320xf32, #tpu.memory_space<vmem>>, vector<1x32xf32>
    %cst = arith.constant dense<0.000000e+00> : vector<2x32xf32>
    %8 = tpu.matmul %0, %4, %cst {dimension_numbers = #tpu.dot_dimension_numbers<[1], [0], [0], [1], [0, 0, 1, 1], [], []>} : vector<2x128xf32>, vector<128x32xf32>, vector<2x32xf32> -> vector<2x32xf32>
    %9 = vector.broadcast %6 : vector<1x32xf32> to vector<2x32xf32>
    %10 = arith.addf %8, %9 : vector<2x32xf32>
    %cst_12 = arith.constant 0.000000e+00 : f32
    %11 = vector.broadcast %cst_12 : f32 to vector<2x32xf32>
    %12 = arith.maximumf %10, %11 : vector<2x32xf32>
    %cst_13 = arith.constant dense<0.000000e+00> : vector<2x32xf32>
    %13 = tpu.matmul %12, %5, %cst_13 {dimension_numbers = #tpu.dot_dimension_numbers<[1], [0], [0], [1], [0, 0, 1, 1], [], []>} : vector<2x32xf32>, vector<32x32xf32>, vector<2x32xf32> -> vector<2x32xf32>
    %14 = vector.broadcast %7 : vector<1x32xf32> to vector<2x32xf32>
    %15 = arith.addf %13, %14 : vector<2x32xf32>
    %16 = vector.extract_strided_slice %15 {offsets = [0, 0], sizes = [2, 16], strides = [1, 1]} : vector<2x32xf32> to vector<2x16xf32>
    %17 = vector.extract_strided_slice %15 {offsets = [0, 16], sizes = [2, 16], strides = [1, 1]} : vector<2x32xf32> to vector<2x16xf32>
    %cst_14 = arith.constant 5.000000e-01 : f32
    %18 = vector.broadcast %cst_14 : f32 to vector<2x16xf32>
    %19 = arith.mulf %18, %17 : vector<2x16xf32>
    %20 = math.exp %19 : vector<2x16xf32>
    %21 = arith.mulf %20, %2 : vector<2x16xf32>
    %22 = arith.addf %16, %21 : vector<2x16xf32>
    %c160 = arith.constant 160 : index
    %c0_15 = arith.constant 0 : index
    %23 = vector.load %arg1[%c160, %c0_15] : memref<320x32xf32, #tpu.memory_space<vmem>>, vector<128x32xf32>
    %c288 = arith.constant 288 : index
    %c0_16 = arith.constant 0 : index
    %24 = vector.load %arg1[%c288, %c0_16] : memref<320x32xf32, #tpu.memory_space<vmem>>, vector<32x32xf32>
    %c0_17 = arith.constant 0 : index
    %c64 = arith.constant 64 : index
    %25 = vector.load %arg3[%c0_17, %c64] : memref<1x320xf32, #tpu.memory_space<vmem>>, vector<1x32xf32>
    %c0_18 = arith.constant 0 : index
    %c96 = arith.constant 96 : index
    %26 = vector.load %arg3[%c0_18, %c96] : memref<1x320xf32, #tpu.memory_space<vmem>>, vector<1x32xf32>
    %cst_19 = arith.constant dense<0.000000e+00> : vector<2x32xf32>
    %27 = tpu.matmul %1, %23, %cst_19 {dimension_numbers = #tpu.dot_dimension_numbers<[1], [0], [0], [1], [0, 0, 1, 1], [], []>} : vector<2x128xf32>, vector<128x32xf32>, vector<2x32xf32> -> vector<2x32xf32>
    %28 = vector.broadcast %25 : vector<1x32xf32> to vector<2x32xf32>
    %29 = arith.addf %27, %28 : vector<2x32xf32>
    %cst_20 = arith.constant 0.000000e+00 : f32
    %30 = vector.broadcast %cst_20 : f32 to vector<2x32xf32>
    %31 = arith.maximumf %29, %30 : vector<2x32xf32>
    %cst_21 = arith.constant dense<0.000000e+00> : vector<2x32xf32>
    %32 = tpu.matmul %31, %24, %cst_21 {dimension_numbers = #tpu.dot_dimension_numbers<[1], [0], [0], [1], [0, 0, 1, 1], [], []>} : vector<2x32xf32>, vector<32x32xf32>, vector<2x32xf32> -> vector<2x32xf32>
    %33 = vector.broadcast %26 : vector<1x32xf32> to vector<2x32xf32>
    %34 = arith.addf %32, %33 : vector<2x32xf32>
    %35 = vector.extract_strided_slice %34 {offsets = [0, 0], sizes = [2, 16], strides = [1, 1]} : vector<2x32xf32> to vector<2x16xf32>
    %36 = vector.extract_strided_slice %34 {offsets = [0, 16], sizes = [2, 16], strides = [1, 1]} : vector<2x32xf32> to vector<2x16xf32>
    %cst_22 = arith.constant 5.000000e-01 : f32
    %37 = vector.broadcast %cst_22 : f32 to vector<2x16xf32>
    %38 = arith.mulf %37, %36 : vector<2x16xf32>
    %39 = math.exp %38 : vector<2x16xf32>
    %40 = arith.mulf %39, %3 : vector<2x16xf32>
    %41 = arith.addf %35, %40 : vector<2x16xf32>
    %42 = tpu.concatenate %22, %41 in 0 : vector<2x16xf32>, vector<2x16xf32> -> vector<4x16xf32>
    %c0_23 = arith.constant 0 : index
    %c0_24 = arith.constant 0 : index
    %43 = vector.load %arg2[%c0_23, %c0_24] : memref<80x128xf32, #tpu.memory_space<vmem>>, vector<16x64xf32>
    %c16 = arith.constant 16 : index
    %c0_25 = arith.constant 0 : index
    %44 = vector.load %arg2[%c16, %c0_25] : memref<80x128xf32, #tpu.memory_space<vmem>>, vector<64x128xf32>
    %c0_26 = arith.constant 0 : index
    %c128_27 = arith.constant 128 : index
    %45 = vector.load %arg3[%c0_26, %c128_27] : memref<1x320xf32, #tpu.memory_space<vmem>>, vector<1x64xf32>
    %c0_28 = arith.constant 0 : index
    %c192 = arith.constant 192 : index
    %46 = vector.load %arg3[%c0_28, %c192] : memref<1x320xf32, #tpu.memory_space<vmem>>, vector<1x128xf32>
    %cst_29 = arith.constant dense<0.000000e+00> : vector<4x64xf32>
    %47 = tpu.matmul %42, %43, %cst_29 {dimension_numbers = #tpu.dot_dimension_numbers<[1], [0], [0], [1], [0, 0, 1, 1], [], []>} : vector<4x16xf32>, vector<16x64xf32>, vector<4x64xf32> -> vector<4x64xf32>
    %48 = vector.broadcast %45 : vector<1x64xf32> to vector<4x64xf32>
    %49 = arith.addf %47, %48 : vector<4x64xf32>
    %cst_30 = arith.constant 0.000000e+00 : f32
    %50 = vector.broadcast %cst_30 : f32 to vector<4x64xf32>
    %51 = arith.maximumf %49, %50 : vector<4x64xf32>
    %cst_31 = arith.constant dense<0.000000e+00> : vector<4x128xf32>
    %52 = tpu.matmul %51, %44, %cst_31 {dimension_numbers = #tpu.dot_dimension_numbers<[1], [0], [0], [1], [0, 0, 1, 1], [], []>} : vector<4x64xf32>, vector<64x128xf32>, vector<4x128xf32> -> vector<4x128xf32>
    %53 = vector.broadcast %46 : vector<1x128xf32> to vector<4x128xf32>
    %54 = arith.addf %52, %53 : vector<4x128xf32>
    %55 = tpu.concatenate %15, %22 in 1 : vector<2x32xf32>, vector<2x16xf32> -> vector<2x48xf32>
    %56 = tpu.concatenate %34, %41 in 1 : vector<2x32xf32>, vector<2x16xf32> -> vector<2x48xf32>
    %57 = tpu.concatenate %55, %56 in 0 : vector<2x48xf32>, vector<2x48xf32> -> vector<4x48xf32>
    %c0_32 = arith.constant 0 : index
    %c0_33 = arith.constant 0 : index
    %58 = vector.load %arg4[%c0_32, %c0_33] : memref<4x176xf32, #tpu.memory_space<vmem>>, vector<4x128xf32>
    tpu.vector_store %arg4[%c0_32, %c0_33], %54 {strides = array<i32>} : memref<4x176xf32, #tpu.memory_space<vmem>>, vector<4x128xf32>,
    %c0_34 = arith.constant 0 : index
    %c128_35 = arith.constant 128 : index
    %59 = vector.load %arg4[%c0_34, %c128_35] : memref<4x176xf32, #tpu.memory_space<vmem>>, vector<4x48xf32>
    tpu.vector_store %arg4[%c0_34, %c128_35], %57 {strides = array<i32>} : memref<4x176xf32, #tpu.memory_space<vmem>>, vector<4x48xf32>,
    return
  }
}

</mosaic_0001>

<llo_original>
// kernel: pairvae_forward.1
$region0: #{pairvae_forward.1}
  #allocation0 [shape = 'u32[]', space=smem, size = 0x4, offset = 0x4, fixed_abs, tag = 'smem constant byte address 0x4 - core index']
  #allocation1 [shape = 'u32[144,128]{1,0:T(1,128)}', space=vmem, size = 0x12000, scoped, tag = 'internal scratch']
  %s0 = inlined_call_operand.vmem [shape: f32[4,144], index: 0, kind: input, shape index: {}]
  %s1 = inlined_call_operand.vmem [shape: f32[320,32], index: 1, kind: input, shape index: {}]
  %s2 = inlined_call_operand.vmem [shape: f32[80,128], index: 2, kind: input, shape index: {}]
  %s3 = inlined_call_operand.vmem [shape: f32[1,320], index: 3, kind: input, shape index: {}]
  %s4 = inlined_call_operand.vmem [shape: f32[4,176], index: 4, kind: output, shape index: {}]
  %s5 = sld [smem:[#allocation0]]
  $region26: #{pairvae_forward.1} parent=0
    _
  %s7 = ssub.s32 1, %s5
  %s8 = scalar_select 0, %s7, %s5
  // Predicated region
  $region2: #{pairvae_forward.1} parent=0 // pred_check
    _
  $region3: #{pairvae_forward.1} parent=0 // pred_check_branch
    %10 = sbr.rel (0) target = $region5
  $region4: #{pairvae_forward.1} parent=0 // pred_region
    _
  $region5: #{pairvae_forward.1} parent=0 // pred_fallthru
    _
  // Predicated region
  $region6: #{pairvae_forward.1} parent=0 // pred_check
    _
  $region7: #{pairvae_forward.1} parent=0 // pred_check_branch
    %12 = sbr.rel (0) target = $region9
  $region8: #{pairvae_forward.1} parent=0 // pred_region
    _
  $region9: #{pairvae_forward.1} parent=0 // pred_fallthru
    _
  // Predicated region
  $region10: #{pairvae_forward.1} parent=0 // pred_check
    _
  $region11: #{pairvae_forward.1} parent=0 // pred_check_branch
    %14 = sbr.rel (0) target = $region13
  $region12: #{pairvae_forward.1} parent=0 // pred_region
    _
  $region13: #{pairvae_forward.1} parent=0 // pred_fallthru
    _
  // Predicated region
  $region14: #{pairvae_forward.1} parent=0 // pred_check
    _
  $region15: #{pairvae_forward.1} parent=0 // pred_check_branch
    %16 = sbr.rel (0) target = $region17
  $region16: #{pairvae_forward.1} parent=0 // pred_region
    _
  $region17: #{pairvae_forward.1} parent=0 // pred_fallthru
    _
  %v17 = vld [vmem:[%s0] sm:$0x3]
  %v18 = vld [vmem:[%s0] sm:$0xc]
  %v19 = vld [vmem:[%s0 + $0x4] sm:$0x3]
  %v20 = vld [vmem:[%s0 + $0x4] sm:$0xc]
  %v21 = vld [vmem:[%s1] sm:$0xff]
  %v22 = vld [vmem:[%s1 + $0x8] sm:$0xff]
  %v23 = vld [vmem:[%s1 + $0x10] sm:$0xff]
  %v24 = vld [vmem:[%s1 + $0x18] sm:$0xff]
  %v25 = vld [vmem:[%s1 + $0x20] sm:$0xff]
  %v26 = vld [vmem:[%s1 + $0x28] sm:$0xff]
  %v27 = vld [vmem:[%s1 + $0x30] sm:$0xff]
  %v28 = vld [vmem:[%s1 + $0x38] sm:$0xff]
  %v29 = vld [vmem:[%s1 + $0x40] sm:$0xff]
  %v30 = vld [vmem:[%s1 + $0x48] sm:$0xff]
  %v31 = vld [vmem:[%s1 + $0x50] sm:$0xff]
  %v32 = vld [vmem:[%s1 + $0x58] sm:$0xff]
  %v33 = vld [vmem:[%s1 + $0x60] sm:$0xff]
  %v34 = vld [vmem:[%s1 + $0x68] sm:$0xff]
  %v35 = vld [vmem:[%s1 + $0x70] sm:$0xff]
  %v36 = vld [vmem:[%s1 + $0x78] sm:$0xff]
  %v37 = vld [vmem:[%s1 + $0x80] sm:$0xff]
  %v38 = vld [vmem:[%s1 + $0x88] sm:$0xff]
  %v39 = vld [vmem:[%s1 + $0x90] sm:$0xff]
  %v40 = vld [vmem:[%s1 + $0x98] sm:$0xff]
  %v41 = vld [vmem:[%s3] sm:$0x1]
  %v43 = vlaneseq
  %v44 = vshrl.u32 %v43, 7
  %v45 = vsub.s32 0, %v44
  %v46 = vrot.slane %v41, %v45
  %48 = vmatprep.subr.mxu0 0.0
  %49 = vmatpush1.msra.mxu0 %v21
  %50 = vmatprep.subr.mxu0 0.0
  %51 = vmatpush1.msra.mxu0 %v22
  %52 = vmatprep.subr.mxu0 0.0
  %53 = vmatpush1.msra.mxu0 %v23
  %54 = vmatprep.subr.mxu0 0.0
  %55 = vmatpush1.msra.mxu0 %v24
  %56 = vmatprep.subr.mxu0 0.0
  %57 = vmatpush1.msra.mxu0 %v25
  %58 = vmatprep.subr.mxu0 0.0
  %59 = vmatpush1.msra.mxu0 %v26
  %60 = vmatprep.subr.mxu0 0.0
  %61 = vmatpush1.msra.mxu0 %v27
  %62 = vmatprep.subr.mxu0 0.0
  %63 = vmatpush1.msra.mxu0 %v28
  %64 = vmatprep.subr.mxu0 0.0
  %65 = vmatpush1.msra.mxu0 %v29
  %66 = vmatprep.subr.mxu0 0.0
  %67 = vmatpush1.msra.mxu0 %v30
  %68 = vmatprep.subr.mxu0 0.0
  %69 = vmatpush1.msra.mxu0 %v31
  %70 = vmatprep.subr.mxu0 0.0
  %71 = vmatpush1.msra.mxu0 %v32
  %72 = vmatprep.subr.mxu0 0.0
  %73 = vmatpush1.msra.mxu0 %v33
  %74 = vmatprep.subr.mxu0 0.0
  %75 = vmatpush1.msra.mxu0 %v34
  %76 = vmatprep.subr.mxu0 0.0
  %77 = vmatpush1.msra.mxu0 %v35
  %78 = vmatprep.subr.mxu0 0.0
  %79 = vmatpush1.msra.mxu0 %v36
  %80 = vmatprep.subr.mxu0 0.0
  %81 = vmatpush1.msra.mxu0 0.0
  %82 = vmatprep.subr.mxu0 0.0
  %83 = vmatpush1.msra.mxu0 0.0
  %84 = vmatprep.subr.mxu0 0.0
  %85 = vmatpush1.msra.mxu0 0.0
  %86 = vmatprep.subr.mxu0 0.0
  %87 = vmatpush1.msra.mxu0 0.0
  %88 = vmatprep.subr.mxu0 0.0
  %89 = vmatpush1.msra.mxu0 0.0
  %90 = vmatprep.subr.mxu0 0.0
  %91 = vmatpush1.msra.mxu0 0.0
  %92 = vmatprep.subr.mxu0 0.0
  %93 = vmatpush1.msra.mxu0 0.0
  %94 = vmatprep.subr.mxu0 0.0
  %95 = vmatpush1.msra.mxu0 0.0
  %96 = vmatprep.subr.mxu0 0.0
  %97 = vmatpush1.msra.mxu0 0.0
  %98 = vmatprep.subr.mxu0 0.0
  %99 = vmatpush1.msra.mxu0 0.0
  %100 = vmatprep.subr.mxu0 0.0
  %101 = vmatpush1.msra.mxu0 0.0
  %102 = vmatprep.subr.mxu0 0.0
  %103 = vmatpush1.msra.mxu0 0.0
  %104 = vmatprep.subr.mxu0 0.0
  %105 = vmatpush1.msra.mxu0 0.0
  %106 = vmatprep.subr.mxu0 0.0
  %107 = vmatpush1.msra.mxu0 0.0
  %108 = vmatprep.subr.mxu0 0.0
  %109 = vmatpush1.msra.mxu0 0.0
  %110 = vmatprep.subr.mxu0 0.0
  %111 = vmatpush1.msra.mxu0 0.0
  %112 = vmatprep.mubr.f32.mxu0 0.0
  %113 = vmatmul.mubr.f32.gmra.mrb[0].mxu0 %v17
  %v114 = vpop.f32.mrb[0].mxu0
  %v115 = vadd.f32 %v46, %v114
  %v116 = vpop.f32.mrb[0].mxu0
  %117 = vdwg.mxu0
  %v118 = vmax.f32 %v115, 0.0
  %119 = vrot.lane.b32.xlu0 %v46, 96
  %v120 = vpop.permute.xlu0 %119
  %vm122 = vcmask 261120
  %v124 = vsel %vm122, %v118, 0
  %126 = vmatprep.subr.mxu0 0.0
  %127 = vmatpush1.msra.mxu0 %v37
  %128 = vmatprep.subr.mxu0 0.0
  %129 = vmatpush1.msra.mxu0 %v38
  %130 = vmatprep.subr.mxu0 0.0
  %131 = vmatpush1.msra.mxu0 %v39
  %132 = vmatprep.subr.mxu0 0.0
  %133 = vmatpush1.msra.mxu0 %v40
  %134 = vmatprep.subr.mxu0 0.0
  %135 = vmatpush1.msra.mxu0 0.0
  %136 = vmatprep.subr.mxu0 0.0
  %137 = vmatpush1.msra.mxu0 0.0
  %138 = vmatprep.subr.mxu0 0.0
  %139 = vmatpush1.msra.mxu0 0.0
  %140 = vmatprep.subr.mxu0 0.0
  %141 = vmatpush1.msra.mxu0 0.0
  %142 = vmatprep.subr.mxu0 0.0
  %143 = vmatpush1.msra.mxu0 0.0
  %144 = vmatprep.subr.mxu0 0.0
  %145 = vmatpush1.msra.mxu0 0.0
  %146 = vmatprep.subr.mxu0 0.0
  %147 = vmatpush1.msra.mxu0 0.0
  %148 = vmatprep.subr.mxu0 0.0
  %149 = vmatpush1.msra.mxu0 0.0
  %150 = vmatprep.subr.mxu0 0.0
  %151 = vmatpush1.msra.mxu0 0.0
  %152 = vmatprep.subr.mxu0 0.0
  %153 = vmatpush1.msra.mxu0 0.0
  %154 = vmatprep.subr.mxu0 0.0
  %155 = vmatpush1.msra.mxu0 0.0
  %156 = vmatprep.subr.mxu0 0.0
  %157 = vmatpush1.msra.mxu0 0.0
  %158 = vmatprep.subr.mxu0 0.0
  %159 = vmatpush1.msra.mxu0 0.0
  %160 = vmatprep.subr.mxu0 0.0
  %161 = vmatpush1.msra.mxu0 0.0
  %162 = vmatprep.subr.mxu0 0.0
  %163 = vmatpush1.msra.mxu0 0.0
  %164 = vmatprep.subr.mxu0 0.0
  %165 = vmatpush1.msra.mxu0 0.0
  %166 = vmatprep.subr.mxu0 0.0
  %167 = vmatpush1.msra.mxu0 0.0
  %168 = vmatprep.subr.mxu0 0.0
  %169 = vmatpush1.msra.mxu0 0.0
  %170 = vmatprep.subr.mxu0 0.0
  %171 = vmatpush1.msra.mxu0 0.0
  %172 = vmatprep.subr.mxu0 0.0
  %173 = vmatpush1.msra.mxu0 0.0
  %174 = vmatprep.subr.mxu0 0.0
  %175 = vmatpush1.msra.mxu0 0.0
  %176 = vmatprep.subr.mxu0 0.0
  %177 = vmatpush1.msra.mxu0 0.0
  %178 = vmatprep.subr.mxu0 0.0
  %179 = vmatpush1.msra.mxu0 0.0
  %180 = vmatprep.subr.mxu0 0.0
  %181 = vmatpush1.msra.mxu0 0.0
  %182 = vmatprep.subr.mxu0 0.0
  %183 = vmatpush1.msra.mxu0 0.0
  %184 = vmatprep.subr.mxu0 0.0
  %185 = vmatpush1.msra.mxu0 0.0
  %186 = vmatprep.subr.mxu0 0.0
  %187 = vmatpush1.msra.mxu0 0.0
  %188 = vmatprep.subr.mxu0 0.0
  %189 = vmatpush1.msra.mxu0 0.0
  %190 = vmatprep.mubr.f32.mxu0 0.0
  %191 = vmatmul.mubr.f32.gmra.mrb[0].mxu0 %v124
  %v192 = vpop.f32.mrb[0].mxu0
  %v193 = vadd.f32 %v120, %v192
  %v194 = vpop.f32.mrb[0].mxu0
  %195 = vdwg.mxu0
  %v196 = vmul.f32 %v193, 0.5
  %v197 = vmul.f32 %v196, 1.442695
  %v198 = vpow.pop %v197
  %200 = vrot.lane.b32.xlu0 %v19, 16
  %v201 = vpop.permute.xlu0 %200
  %v203 = vmul.f32 %v198, %v201
  %205 = vrot.lane.b32.xlu0 %v203, 112
  %v206 = vpop.permute.xlu0 %205
  %v208 = vadd.f32 %v193, %v206
  %v209 = vld [vmem:[%s1 + $0xa0] sm:$0xff]
  %v210 = vld [vmem:[%s1 + $0xa8] sm:$0xff]
  %v211 = vld [vmem:[%s1 + $0xb0] sm:$0xff]
  %v212 = vld [vmem:[%s1 + $0xb8] sm:$0xff]
  %v213 = vld [vmem:[%s1 + $0xc0] sm:$0xff]
  %v214 = vld [vmem:[%s1 + $0xc8] sm:$0xff]
  %v215 = vld [vmem:[%s1 + $0xd0] sm:$0xff]
  %v216 = vld [vmem:[%s1 + $0xd8] sm:$0xff]
  %v217 = vld [vmem:[%s1 + $0xe0] sm:$0xff]
  %v218 = vld [vmem:[%s1 + $0xe8] sm:$0xff]
  %v219 = vld [vmem:[%s1 + $0xf0] sm:$0xff]
  %v220 = vld [vmem:[%s1 + $0xf8] sm:$0xff]
  %v221 = vld [vmem:[%s1 + $0x100] sm:$0xff]
  %v222 = vld [vmem:[%s1 + $0x108] sm:$0xff]
  %v223 = vld [vmem:[%s1 + $0x110] sm:$0xff]
  %v224 = vld [vmem:[%s1 + $0x118] sm:$0xff]
  %v225 = vld [vmem:[%s1 + $0x120] sm:$0xff]
  %v226 = vld [vmem:[%s1 + $0x128] sm:$0xff]
  %v227 = vld [vmem:[%s1 + $0x130] sm:$0xff]
  %v228 = vld [vmem:[%s1 + $0x138] sm:$0xff]
  %v229 = vld [vmem:[%s3] sm:$0x1]
  %v231 = vlaneseq
  %v232 = vshrl.u32 %v231, 7
  %v233 = vsub.s32 0, %v232
  %v234 = vrot.slane %v229, %v233
  %v236 = vrot.slane %v18, 2
  %238 = vrot.lane.b32.xlu0 %v234, 64
  %v239 = vpop.permute.xlu0 %238
  %241 = vmatprep.subr.mxu0 0.0
  %242 = vmatpush1.msra.mxu0 %v209
  %243 = vmatprep.subr.mxu0 0.0
  %244 = vmatpush1.msra.mxu0 %v210
  %245 = vmatprep.subr.mxu0 0.0
  %246 = vmatpush1.msra.mxu0 %v211
  %247 = vmatprep.subr.mxu0 0.0
  %248 = vmatpush1.msra.mxu0 %v212
  %249 = vmatprep.subr.mxu0 0.0
  %250 = vmatpush1.msra.mxu0 %v213
  %251 = vmatprep.subr.mxu0 0.0
  %252 = vmatpush1.msra.mxu0 %v214
  %253 = vmatprep.subr.mxu0 0.0
  %254 = vmatpush1.msra.mxu0 %v215
  %255 = vmatprep.subr.mxu0 0.0
  %256 = vmatpush1.msra.mxu0 %v216
  %257 = vmatprep.subr.mxu0 0.0
  %258 = vmatpush1.msra.mxu0 %v217
  %259 = vmatprep.subr.mxu0 0.0
  %260 = vmatpush1.msra.mxu0 %v218
  %261 = vmatprep.subr.mxu0 0.0
  %262 = vmatpush1.msra.mxu0 %v219
  %263 = vmatprep.subr.mxu0 0.0
  %264 = vmatpush1.msra.mxu0 %v220
  %265 = vmatprep.subr.mxu0 0.0
  %266 = vmatpush1.msra.mxu0 %v221
  %267 = vmatprep.subr.mxu0 0.0
  %268 = vmatpush1.msra.mxu0 %v222
  %269 = vmatprep.subr.mxu0 0.0
  %270 = vmatpush1.msra.mxu0 %v223
  %271 = vmatprep.subr.mxu0 0.0
  %272 = vmatpush1.msra.mxu0 %v224
  %273 = vmatprep.subr.mxu0 0.0
  %274 = vmatpush1.msra.mxu0 0.0
  %275 = vmatprep.subr.mxu0 0.0
  %276 = vmatpush1.msra.mxu0 0.0
  %277 = vmatprep.subr.mxu0 0.0
  %278 = vmatpush1.msra.mxu0 0.0
  %279 = vmatprep.subr.mxu0 0.0
  %280 = vmatpush1.msra.mxu0 0.0
  %281 = vmatprep.subr.mxu0 0.0
  %282 = vmatpush1.msra.mxu0 0.0
  %283 = vmatprep.subr.mxu0 0.0
  %284 = vmatpush1.msra.mxu0 0.0
  %285 = vmatprep.subr.mxu0 0.0
  %286 = vmatpush1.msra.mxu0 0.0
  %287 = vmatprep.subr.mxu0 0.0
  %288 = vmatpush1.msra.mxu0 0.0
  %289 = vmatprep.subr.mxu0 0.0
  %290 = vmatpush1.msra.mxu0 0.0
  %291 = vmatprep.subr.mxu0 0.0
  %292 = vmatpush1.msra.mxu0 0.0
  %293 = vmatprep.subr.mxu0 0.0
  %294 = vmatpush1.msra.mxu0 0.0
  %295 = vmatprep.subr.mxu0 0.0
  %296 = vmatpush1.msra.mxu0 0.0
  %297 = vmatprep.subr.mxu0 0.0
  %298 = vmatpush1.msra.mxu0 0.0
  %299 = vmatprep.subr.mxu0 0.0
  %300 = vmatpush1.msra.mxu0 0.0
  %301 = vmatprep.subr.mxu0 0.0
  %302 = vmatpush1.msra.mxu0 0.0
  %303 = vmatprep.subr.mxu0 0.0
  %304 = vmatpush1.msra.mxu0 0.0
  %305 = vmatprep.mubr.f32.mxu0 0.0
  %306 = vmatmul.mubr.f32.gmra.mrb[0].mxu0 %v236
  %v307 = vpop.f32.mrb[0].mxu0
  %v308 = vadd.f32 %v239, %v307
  %v309 = vpop.f32.mrb[0].mxu0
  %310 = vdwg.mxu0
  %v311 = vmax.f32 %v308, 0.0
  %312 = vrot.lane.b32.xlu0 %v234, 32
  %v313 = vpop.permute.xlu0 %312
  %v316 = vsel %vm122, %v311, 0
  %318 = vmatprep.subr.mxu0 0.0
  %319 = vmatpush1.msra.mxu0 %v225
  %320 = vmatprep.subr.mxu0 0.0
  %321 = vmatpush1.msra.mxu0 %v226
  %322 = vmatprep.subr.mxu0 0.0
  %323 = vmatpush1.msra.mxu0 %v227
  %324 = vmatprep.subr.mxu0 0.0
  %325 = vmatpush1.msra.mxu0 %v228
  %326 = vmatprep.subr.mxu0 0.0
  %327 = vmatpush1.msra.mxu0 0.0
  %328 = vmatprep.subr.mxu0 0.0
  %329 = vmatpush1.msra.mxu0 0.0
  %330 = vmatprep.subr.mxu0 0.0
  %331 = vmatpush1.msra.mxu0 0.0
  %332 = vmatprep.subr.mxu0 0.0
  %333 = vmatpush1.msra.mxu0 0.0
  %334 = vmatprep.subr.mxu0 0.0
  %335 = vmatpush1.msra.mxu0 0.0
  %336 = vmatprep.subr.mxu0 0.0
  %337 = vmatpush1.msra.mxu0 0.0
  %338 = vmatprep.subr.mxu0 0.0
  %339 = vmatpush1.msra.mxu0 0.0
  %340 = vmatprep.subr.mxu0 0.0
  %341 = vmatpush1.msra.mxu0 0.0
  %342 = vmatprep.subr.mxu0 0.0
  %343 = vmatpush1.msra.mxu0 0.0
  %344 = vmatprep.subr.mxu0 0.0
  %345 = vmatpush1.msra.mxu0 0.0
  %346 = vmatprep.subr.mxu0 0.0
  %347 = vmatpush1.msra.mxu0 0.0
  %348 = vmatprep.subr.mxu0 0.0
  %349 = vmatpush1.msra.mxu0 0.0
  %350 = vmatprep.subr.mxu0 0.0
  %351 = vmatpush1.msra.mxu0 0.0
  %352 = vmatprep.subr.mxu0 0.0
  %353 = vmatpush1.msra.mxu0 0.0
  %354 = vmatprep.subr.mxu0 0.0
  %355 = vmatpush1.msra.mxu0 0.0
  %356 = vmatprep.subr.mxu0 0.0
  %357 = vmatpush1.msra.mxu0 0.0
  %358 = vmatprep.subr.mxu0 0.0
  %359 = vmatpush1.msra.mxu0 0.0
  %360 = vmatprep.subr.mxu0 0.0
  %361 = vmatpush1.msra.mxu0 0.0
  %362 = vmatprep.subr.mxu0 0.0
  %363 = vmatpush1.msra.mxu0 0.0
  %364 = vmatprep.subr.mxu0 0.0
  %365 = vmatpush1.msra.mxu0 0.0
  %366 = vmatprep.subr.mxu0 0.0
  %367 = vmatpush1.msra.mxu0 0.0
  %368 = vmatprep.subr.mxu0 0.0
  %369 = vmatpush1.msra.mxu0 0.0
  %370 = vmatprep.subr.mxu0 0.0
  %371 = vmatpush1.msra.mxu0 0.0
  %372 = vmatprep.subr.mxu0 0.0
  %373 = vmatpush1.msra.mxu0 0.0
  %374 = vmatprep.subr.mxu0 0.0
  %375 = vmatpush1.msra.mxu0 0.0
  %376 = vmatprep.subr.mxu0 0.0
  %377 = vmatpush1.msra.mxu0 0.0
  %378 = vmatprep.subr.mxu0 0.0
  %379 = vmatpush1.msra.mxu0 0.0
  %380 = vmatprep.subr.mxu0 0.0
  %381 = vmatpush1.msra.mxu0 0.0
  %382 = vmatprep.mubr.f32.mxu0 0.0
  %383 = vmatmul.mubr.f32.gmra.mrb[0].mxu0 %v316
  %v384 = vpop.f32.mrb[0].mxu0
  %v385 = vadd.f32 %v313, %v384
  %v386 = vpop.f32.mrb[0].mxu0
  %387 = vdwg.mxu0
  %v388 = vmul.f32 %v385, 0.5
  %v389 = vmul.f32 %v388, 1.442695
  %v390 = vpow.pop %v389
  %v392 = vrot.slane %v20, 2
  %393 = vrot.lane.b32.xlu0 %v392, 16
  %v394 = vpop.permute.xlu0 %393
  %v396 = vmul.f32 %v390, %v394
  %398 = vrot.lane.b32.xlu0 %v396, 112
  %v399 = vpop.permute.xlu0 %398
  %v401 = vadd.f32 %v385, %v399
  %v403 = vrot.slane %v401, 6
  %vm405 = vcmask 1041408
  %v406 = vsel %vm405, %v208, %v403
  %v407 = vld [vmem:[%s2] sm:$0xff]
  %v408 = vld [vmem:[%s2 + $0x8] sm:$0xff]
  %v409 = vld [vmem:[%s2 + $0x10] sm:$0xff]
  %v410 = vld [vmem:[%s2 + $0x18] sm:$0xff]
  %v411 = vld [vmem:[%s2 + $0x20] sm:$0xff]
  %v412 = vld [vmem:[%s2 + $0x28] sm:$0xff]
  %v413 = vld [vmem:[%s2 + $0x30] sm:$0xff]
  %v414 = vld [vmem:[%s2 + $0x38] sm:$0xff]
  %v415 = vld [vmem:[%s2 + $0x40] sm:$0xff]
  %v416 = vld [vmem:[%s2 + $0x48] sm:$0xff]
  %v417 = vld [vmem:[%s3 + $0x1] sm:$0x1]
  %v418 = vld [vmem:[%s3 + $0x1] sm:$0x3]
  %v420 = vlaneseq
  %v421 = vshrl.u32 %v420, 7
  %v422 = vsub.s32 0, %v421
  %v423 = vrot.slane %v417, %v422
  %vm425 = vcmask 130048
  %v427 = vsel %vm425, %v406, 0
  %429 = vmatprep.subr.mxu0 0.0
  %430 = vmatpush1.msra.mxu0 %v407
  %431 = vmatprep.subr.mxu0 0.0
  %432 = vmatpush1.msra.mxu0 %v408
  %433 = vmatprep.subr.mxu0 0.0
  %434 = vmatpush1.msra.mxu0 0.0
  %435 = vmatprep.subr.mxu0 0.0
  %436 = vmatpush1.msra.mxu0 0.0
  %437 = vmatprep.subr.mxu0 0.0
  %438 = vmatpush1.msra.mxu0 0.0
  %439 = vmatprep.subr.mxu0 0.0
  %440 = vmatpush1.msra.mxu0 0.0
  %441 = vmatprep.subr.mxu0 0.0
  %442 = vmatpush1.msra.mxu0 0.0
  %443 = vmatprep.subr.mxu0 0.0
  %444 = vmatpush1.msra.mxu0 0.0
  %445 = vmatprep.subr.mxu0 0.0
  %446 = vmatpush1.msra.mxu0 0.0
  %447 = vmatprep.subr.mxu0 0.0
  %448 = vmatpush1.msra.mxu0 0.0
  %449 = vmatprep.subr.mxu0 0.0
  %450 = vmatpush1.msra.mxu0 0.0
  %451 = vmatprep.subr.mxu0 0.0
  %452 = vmatpush1.msra.mxu0 0.0
  %453 = vmatprep.subr.mxu0 0.0
  %454 = vmatpush1.msra.mxu0 0.0
  %455 = vmatprep.subr.mxu0 0.0
  %456 = vmatpush1.msra.mxu0 0.0
  %457 = vmatprep.subr.mxu0 0.0
  %458 = vmatpush1.msra.mxu0 0.0
  %459 = vmatprep.subr.mxu0 0.0
  %460 = vmatpush1.msra.mxu0 0.0
  %461 = vmatprep.subr.mxu0 0.0
  %462 = vmatpush1.msra.mxu0 0.0
  %463 = vmatprep.subr.mxu0 0.0
  %464 = vmatpush1.msra.mxu0 0.0
  %465 = vmatprep.subr.mxu0 0.0
  %466 = vmatpush1.msra.mxu0 0.0
  %467 = vmatprep.subr.mxu0 0.0
  %468 = vmatpush1.msra.mxu0 0.0
  %469 = vmatprep.subr.mxu0 0.0
  %470 = vmatpush1.msra.mxu0 0.0
  %471 = vmatprep.subr.mxu0 0.0
  %472 = vmatpush1.msra.mxu0 0.0
  %473 = vmatprep.subr.mxu0 0.0
  %474 = vmatpush1.msra.mxu0 0.0
  %475 = vmatprep.subr.mxu0 0.0
  %476 = vmatpush1.msra.mxu0 0.0
  %477 = vmatprep.subr.mxu0 0.0
  %478 = vmatpush1.msra.mxu0 0.0
  %479 = vmatprep.subr.mxu0 0.0
  %480 = vmatpush1.msra.mxu0 0.0
  %481 = vmatprep.subr.mxu0 0.0
  %482 = vmatpush1.msra.mxu0 0.0
  %483 = vmatprep.subr.mxu0 0.0
  %484 = vmatpush1.msra.mxu0 0.0
  %485 = vmatprep.subr.mxu0 0.0
  %486 = vmatpush1.msra.mxu0 0.0
  %487 = vmatprep.subr.mxu0 0.0
  %488 = vmatpush1.msra.mxu0 0.0
  %489 = vmatprep.subr.mxu0 0.0
  %490 = vmatpush1.msra.mxu0 0.0
  %491 = vmatprep.subr.mxu0 0.0
  %492 = vmatpush1.msra.mxu0 0.0
  %493 = vmatprep.mubr.f32.mxu0 0.0
  %494 = vmatmul.mubr.f32.gmra.mrb[0].mxu0 %v427
  %v495 = vpop.f32.mrb[0].mxu0
  %v496 = vadd.f32 %v423, %v495
  %v497 = vpop.f32.mrb[0].mxu0
  %498 = vdwg.mxu0
  %v499 = vmax.f32 %v496, 0.0
  %v501 = vlaneseq
  %v502 = vshrl.u32 %v501, 7
  %v503 = vsub.s32 0, %v502
  %v504 = vrot.slane %v418, %v503
  %v505 = vlaneseq
  %v506 = vshrl.u32 %v505, 7
  %v507 = vsub.s32 1, %v506
  %v508 = vrot.slane %v418, %v507
  %509 = vrot.lane.b32.xlu0 %v504, 64
  %v510 = vpop.permute.xlu0 %509
  %511 = vrot.lane.b32.xlu0 %v508, 64
  %v512 = vpop.permute.xlu0 %511
  %vm513 = vcmask 523264
  %v514 = vsel %vm513, %v510, %v512
  %v517 = vsel %vm513, %v499, 0
  %519 = vmatprep.subr.mxu0 0.0
  %520 = vmatpush1.msra.mxu0 %v409
  %521 = vmatprep.subr.mxu0 0.0
  %522 = vmatpush1.msra.mxu0 %v410
  %523 = vmatprep.subr.mxu0 0.0
  %524 = vmatpush1.msra.mxu0 %v411
  %525 = vmatprep.subr.mxu0 0.0
  %526 = vmatpush1.msra.mxu0 %v412
  %527 = vmatprep.subr.mxu0 0.0
  %528 = vmatpush1.msra.mxu0 %v413
  %529 = vmatprep.subr.mxu0 0.0
  %530 = vmatpush1.msra.mxu0 %v414
  %531 = vmatprep.subr.mxu0 0.0
  %532 = vmatpush1.msra.mxu0 %v415
  %533 = vmatprep.subr.mxu0 0.0
  %534 = vmatpush1.msra.mxu0 %v416
  %535 = vmatprep.subr.mxu0 0.0
  %536 = vmatpush1.msra.mxu0 0.0
  %537 = vmatprep.subr.mxu0 0.0
  %538 = vmatpush1.msra.mxu0 0.0
  %539 = vmatprep.subr.mxu0 0.0
  %540 = vmatpush1.msra.mxu0 0.0
  %541 = vmatprep.subr.mxu0 0.0
  %542 = vmatpush1.msra.mxu0 0.0
  %543 = vmatprep.subr.mxu0 0.0
  %544 = vmatpush1.msra.mxu0 0.0
  %545 = vmatprep.subr.mxu0 0.0
  %546 = vmatpush1.msra.mxu0 0.0
  %547 = vmatprep.subr.mxu0 0.0
  %548 = vmatpush1.msra.mxu0 0.0
  %549 = vmatprep.subr.mxu0 0.0
  %550 = vmatpush1.msra.mxu0 0.0
  %551 = vmatprep.subr.mxu0 0.0
  %552 = vmatpush1.msra.mxu0 0.0
  %553 = vmatprep.subr.mxu0 0.0
  %554 = vmatpush1.msra.mxu0 0.0
  %555 = vmatprep.subr.mxu0 0.0
  %556 = vmatpush1.msra.mxu0 0.0
  %557 = vmatprep.subr.mxu0 0.0
  %558 = vmatpush1.msra.mxu0 0.0
  %559 = vmatprep.subr.mxu0 0.0
  %560 = vmatpush1.msra.mxu0 0.0
  %561 = vmatprep.subr.mxu0 0.0
  %562 = vmatpush1.msra.mxu0 0.0
  %563 = vmatprep.subr.mxu0 0.0
  %564 = vmatpush1.msra.mxu0 0.0
  %565 = vmatprep.subr.mxu0 0.0
  %566 = vmatpush1.msra.mxu0 0.0
  %567 = vmatprep.subr.mxu0 0.0
  %568 = vmatpush1.msra.mxu0 0.0
  %569 = vmatprep.subr.mxu0 0.0
  %570 = vmatpush1.msra.mxu0 0.0
  %571 = vmatprep.subr.mxu0 0.0
  %572 = vmatpush1.msra.mxu0 0.0
  %573 = vmatprep.subr.mxu0 0.0
  %574 = vmatpush1.msra.mxu0 0.0
  %575 = vmatprep.subr.mxu0 0.0
  %576 = vmatpush1.msra.mxu0 0.0
  %577 = vmatprep.subr.mxu0 0.0
  %578 = vmatpush1.msra.mxu0 0.0
  %579 = vmatprep.subr.mxu0 0.0
  %580 = vmatpush1.msra.mxu0 0.0
  %581 = vmatprep.subr.mxu0 0.0
  %582 = vmatpush1.msra.mxu0 0.0
  %583 = vmatprep.mubr.f32.mxu0 0.0
  %584 = vmatmul.mubr.f32.gmra.mrb[0].mxu0 %v517
  %v585 = vpop.f32.mrb[0].mxu0
  %v586 = vadd.f32 %v514, %v585
  %v587 = vpop.f32.mrb[0].mxu0
  %588 = vdwg.mxu0
  %590 = vrot.lane.b32.xlu0 %v208, 32
  %v591 = vpop.permute.xlu0 %590
  %v593 = vsel %vm122, %v193, %v591
  %594 = vrot.lane.b32.xlu0 %v401, 32
  %v595 = vpop.permute.xlu0 %594
  %v597 = vsel %vm122, %v385, %v595
  %v599 = vrot.slane %v597, 6
  %v601 = vsel %vm405, %v593, %v599
  %602 = vst [vmem:[%s4] sm:$0xf] %v586
  %vm603 = vcmask 388096
  %604 = vst.msk [vmem:[%s4 + $0x4] sm:$0xf] %vm603, %v601
  // Predicated region
  $region18: #{pairvae_forward.1} parent=0 // pred_check
    _
  $region19: #{pairvae_forward.1} parent=0 // pred_check_branch
    %606 = sbr.rel (0) target = $region21
  $region20: #{pairvae_forward.1} parent=0 // pred_region
    _
  $region21: #{pairvae_forward.1} parent=0 // pred_fallthru
    _
  // Predicated region
  $region22: #{pairvae_forward.1} parent=0 // pred_check
    _
  $region23: #{pairvae_forward.1} parent=0 // pred_check_branch
    %608 = sbr.rel (0) target = $region25
  $region24: #{pairvae_forward.1} parent=0 // pred_region
    _
  $region25: #{pairvae_forward.1} parent=0 // pred_fallthru
    _

</llo_original>
